<compile_context>
chip_gen: v5e
topology: v5e:2x2
jax: 0.10.0
libtpu: 0.0.40
codegen_flags: <defaults>
</compile_context>

<pallas_src>
import math

import jax
import jax.numpy as jnp
from jax import lax
from jax.experimental import pallas as pl
from jax.experimental.pallas import tpu as pltpu

# ---------------------------------------------------------------------------
# Model hyper-parameters (small, consistent with the module's __init__)
# ---------------------------------------------------------------------------
D_MODEL = 32
NHEAD = 4
HEAD_DIM = D_MODEL // NHEAD
DIM_FF = 64
SEQ = 8
BATCH = 2
LN_EPS = 1e-5
NEG_INF = -1e30


# ---------------------------------------------------------------------------
# Pallas kernel: full decoder layer, all (seq, batch) rows in one invocation
# ---------------------------------------------------------------------------
def decoder_layer_kernel(
    x_ref,                  # (S*B, D)   rows ordered (s, b)  -> batch id = row % B
    wqkv_ref, bqkv_ref,     # (D, 3D), (1, 3D)   (q part pre-scaled by 1/sqrt(hd))
    wo_ref, bo_ref,         # (D, D), (1, D)
    w1_ref, b1_ref,         # (D, F), (1, F)
    w2_ref, b2_ref,         # (F, D), (1, D)
    g1_ref, be1_ref,        # (1, D) LayerNorm1 gamma / beta
    g2_ref, be2_ref,        # (1, D) LayerNorm2 gamma / beta
    o_ref,                  # (S*B, D)
):
    R, D = x_ref.shape
    x = x_ref[...].astype(jnp.float32)

    # ---- fused QKV projection (single MXU pass) -----------------------------
    qkv = jnp.dot(x, wqkv_ref[...], preferred_element_type=jnp.float32) + bqkv_ref[...]

    # ---- hoisted additive mask: kill cross-batch attention pairs ------------
    ri = lax.broadcasted_iota(jnp.int32, (R, R), 0)
    ci = lax.broadcasted_iota(jnp.int32, (R, R), 1)
    mask = jnp.where((ri % BATCH) == (ci % BATCH), 0.0, NEG_INF).astype(jnp.float32)

    # ---- multi-head self-attention: static head unroll, pure 2-D matmuls ----
    wo = wo_ref[...]
    acc = jnp.zeros((R, D), jnp.float32)
    for h in range(NHEAD):
        lo = h * HEAD_DIM
        qh = qkv[:, lo:lo + HEAD_DIM]                       # (R, hd), pre-scaled
        kh = qkv[:, D + lo:D + lo + HEAD_DIM]               # (R, hd)
        vh = qkv[:, 2 * D + lo:2 * D + lo + HEAD_DIM]       # (R, hd)
        # scores = q @ k^T (contract last dims; no explicit transpose materialized)
        s = lax.dot_general(qh, kh, (((1,), (1,)), ((), ())),
                            preferred_element_type=jnp.float32)      # (R, R)
        s = s + mask
        s = s - jnp.max(s, axis=-1, keepdims=True)
        p = jnp.exp(s)
        p = p * pl.reciprocal(jnp.sum(p, axis=-1, keepdims=True), approx=True)
        ctx = jnp.dot(p, vh, preferred_element_type=jnp.float32)     # (R, hd)
        # accumulate the output projection per head -> no lane concatenate
        acc = acc + jnp.dot(ctx, wo[lo:lo + HEAD_DIM, :],
                            preferred_element_type=jnp.float32)      # (R, D)
    attn = acc + bo_ref[...]

    # ---- residual + LayerNorm1 (dropout1 = identity) ------------------------
    x1 = x + attn
    mu1 = jnp.mean(x1, axis=-1, keepdims=True)
    xc1 = x1 - mu1
    var1 = jnp.mean(xc1 * xc1, axis=-1, keepdims=True)
    x1n = xc1 * lax.rsqrt(var1 + LN_EPS) * g1_ref[...] + be1_ref[...]

    # ---- feed-forward (dropout = identity) ----------------------------------
    h1 = jnp.dot(x1n, w1_ref[...], preferred_element_type=jnp.float32) + b1_ref[...]
    h1 = jnp.maximum(h1, 0.0)                               # ReLU
    ffn = jnp.dot(h1, w2_ref[...], preferred_element_type=jnp.float32) + b2_ref[...]

    # ---- residual + LayerNorm2 (dropout2 = identity) ------------------------
    x2 = x1n + ffn
    mu2 = jnp.mean(x2, axis=-1, keepdims=True)
    xc2 = x2 - mu2
    var2 = jnp.mean(xc2 * xc2, axis=-1, keepdims=True)
    out = xc2 * lax.rsqrt(var2 + LN_EPS) * g2_ref[...] + be2_ref[...]

    o_ref[...] = out.astype(o_ref.dtype)


# ---------------------------------------------------------------------------
# Wrapper: (S, B, D) in -> (S, B, D) out. The only host-side layout work is a
# free row-major reshape (no transposes). Everything lives in VMEM (~50 KB).
# ---------------------------------------------------------------------------
@jax.jit
def transformer_decoder_layer(tgt, kp):
    S, B, D = tgt.shape
    x2d = tgt.reshape(S * B, D)
    args = (x2d,
            kp["wqkv"], kp["bqkv"],
            kp["wo"], kp["bo"],
            kp["w1"], kp["b1"],
            kp["w2"], kp["b2"],
            kp["g1"], kp["be1"],
            kp["g2"], kp["be2"])
    vmem = pl.BlockSpec(memory_space=pltpu.MemorySpace.VMEM)
    out2d = pl.pallas_call(
        decoder_layer_kernel,
        out_shape=jax.ShapeDtypeStruct((S * B, D), tgt.dtype),
        in_specs=[vmem] * len(args),
        out_specs=vmem,
    )(*args)
    return out2d.reshape(S, B, D)


# ---------------------------------------------------------------------------
# Deterministic parameter init (shapes match the PyTorch module) + one-time
# kernel-side weight transform (QKV fusion + 1/sqrt(head_dim) folding)
# ---------------------------------------------------------------------------
def init_params(key):
    ks = jax.random.split(key, 8)
    s = 0.1
    return dict(
        wq=jax.random.normal(ks[0], (D_MODEL, D_MODEL), jnp.float32) * s,
        wk=jax.random.normal(ks[1], (D_MODEL, D_MODEL), jnp.float32) * s,
        wv=jax.random.normal(ks[2], (D_MODEL, D_MODEL), jnp.float32) * s,
        wo=jax.random.normal(ks[3], (D_MODEL, D_MODEL), jnp.float32) * s,
        w1=jax.random.normal(ks[4], (D_MODEL, DIM_FF), jnp.float32) * s,
        w2=jax.random.normal(ks[5], (DIM_FF, D_MODEL), jnp.float32) * s,
        bq=jax.random.normal(ks[6], (1, D_MODEL), jnp.float32) * s,
        bk=jnp.zeros((1, D_MODEL), jnp.float32),
        bv=jax.random.normal(ks[7], (1, D_MODEL), jnp.float32) * s,
        bo=jnp.zeros((1, D_MODEL), jnp.float32),
        b1=jnp.zeros((1, DIM_FF), jnp.float32),
        b2=jnp.zeros((1, D_MODEL), jnp.float32),
        g1=jnp.ones((1, D_MODEL), jnp.float32),
        be1=jnp.zeros((1, D_MODEL), jnp.float32),
        g2=jnp.ones((1, D_MODEL), jnp.float32),
        be2=jnp.zeros((1, D_MODEL), jnp.float32),
    )


def prepare_kernel_params(p):
    """One-time weight transform: fuse Q/K/V and fold in 1/sqrt(head_dim)."""
    scale = 1.0 / math.sqrt(HEAD_DIM)
    wqkv = jnp.concatenate([p["wq"] * scale, p["wk"], p["wv"]], axis=1)   # (D, 3D)
    bqkv = jnp.concatenate([p["bq"] * scale, p["bk"], p["bv"]], axis=1)   # (1, 3D)
    return dict(wqkv=wqkv, bqkv=bqkv, wo=p["wo"], bo=p["bo"],
                w1=p["w1"], b1=p["b1"], w2=p["w2"], b2=p["b2"],
                g1=p["g1"], be1=p["be1"], g2=p["g2"], be2=p["be2"])


# ---------------------------------------------------------------------------
# Pure-JAX reference (mirrors the PyTorch forward, dropout = identity)
# ---------------------------------------------------------------------------
def reference(tgt, p):
    x = jnp.transpose(tgt, (1, 0, 2))                         # (B, S, D)
    q = x @ p["wq"] + p["bq"]
    k = x @ p["wk"] + p["bk"]
    v = x @ p["wv"] + p["bv"]
    B, S, D = x.shape
    qh = q.reshape(B, S, NHEAD, HEAD_DIM).transpose(0, 2, 1, 3)
    kh = k.reshape(B, S, NHEAD, HEAD_DIM).transpose(0, 2, 1, 3)
    vh = v.reshape(B, S, NHEAD, HEAD_DIM).transpose(0, 2, 1, 3)
    scores = jnp.einsum("bhqd,bhkd->bhqk", qh, kh) / math.sqrt(HEAD_DIM)
    attn = jax.nn.softmax(scores, axis=-1)
    o = jnp.einsum("bhqk,bhkd->bhqd", attn, vh).transpose(0, 2, 1, 3).reshape(B, S, D)
    o = o @ p["wo"] + p["bo"]
    x1 = x + o

    def ln(z, g, b):
        mu = jnp.mean(z, -1, keepdims=True)
        var = jnp.mean((z - mu) ** 2, -1, keepdims=True)
        return (z - mu) * jax.lax.rsqrt(var + LN_EPS) * g + b

    x1n = ln(x1, p["g1"], p["be1"])
    ffn = jnp.maximum(x1n @ p["w1"] + p["b1"], 0.0) @ p["w2"] + p["b2"]
    x2n = ln(x1n + ffn, p["g2"], p["be2"])
    return jnp.transpose(x2n, (1, 0, 2))


if __name__ == "__main__":
    key = jax.random.PRNGKey(0)
    pkey, xkey = jax.random.split(key)
    raw_params = init_params(pkey)
    kernel_params = prepare_kernel_params(raw_params)

    # tgt: (seq, batch, d_model) — seq-first like nn.MultiheadAttention default
    tgt = jax.random.normal(xkey, (SEQ, BATCH, D_MODEL), jnp.float32)

    out = transformer_decoder_layer(tgt, kernel_params)
    out = jax.block_until_ready(out)

    ref = reference(tgt, raw_params)
    assert out.shape == (SEQ, BATCH, D_MODEL)
    # tolerance allows for the EUP approximate-reciprocal in the softmax
    assert jnp.allclose(out, ref, rtol=3e-3, atol=3e-3), "mismatch vs reference"

    print("KERNEL_OK")
</pallas_src>

<mosaic_0001>
module attributes {stable_mosaic.version = 11 : i64} {
  func.func @decoder_layer_kernel(%arg0: memref<16x32xf32, #tpu.memory_space<vmem>>, %arg1: memref<32x96xf32, #tpu.memory_space<vmem>>, %arg2: memref<1x96xf32, #tpu.memory_space<vmem>>, %arg3: memref<32x32xf32, #tpu.memory_space<vmem>>, %arg4: memref<1x32xf32, #tpu.memory_space<vmem>>, %arg5: memref<32x64xf32, #tpu.memory_space<vmem>>, %arg6: memref<1x64xf32, #tpu.memory_space<vmem>>, %arg7: memref<64x32xf32, #tpu.memory_space<vmem>>, %arg8: memref<1x32xf32, #tpu.memory_space<vmem>>, %arg9: memref<1x32xf32, #tpu.memory_space<vmem>>, %arg10: memref<1x32xf32, #tpu.memory_space<vmem>>, %arg11: memref<1x32xf32, #tpu.memory_space<vmem>>, %arg12: memref<1x32xf32, #tpu.memory_space<vmem>>, %arg13: memref<16x32xf32, #tpu.memory_space<vmem>>) attributes {dimension_semantics = [], scalar_prefetch = 0 : i64, scratch_operands = 0 : i64, tpu.core_type = #tpu.core_type<tc>} {
    %c0 = arith.constant 0 : index
    %c0_0 = arith.constant 0 : index
    %0 = vector.load %arg0[%c0, %c0_0] : memref<16x32xf32, #tpu.memory_space<vmem>>, vector<16x32xf32>
    %c0_1 = arith.constant 0 : index
    %c0_2 = arith.constant 0 : index
    %1 = vector.load %arg1[%c0_1, %c0_2] : memref<32x96xf32, #tpu.memory_space<vmem>>, vector<32x96xf32>
    %cst = arith.constant dense<0.000000e+00> : vector<16x96xf32>
    %2 = tpu.matmul %0, %1, %cst {dimension_numbers = #tpu.dot_dimension_numbers<[1], [0], [0], [1], [0, 0, 1, 1], [], []>} : vector<16x32xf32>, vector<32x96xf32>, vector<16x96xf32> -> vector<16x96xf32>
    %c0_3 = arith.constant 0 : index
    %c0_4 = arith.constant 0 : index
    %3 = vector.load %arg2[%c0_3, %c0_4] : memref<1x96xf32, #tpu.memory_space<vmem>>, vector<1x96xf32>
    %4 = vector.broadcast %3 : vector<1x96xf32> to vector<16x96xf32>
    %5 = arith.addf %2, %4 : vector<16x96xf32>
    %6 = tpu.iota {dimensions = array<i32: 0>} : vector<16x16xi32>
    %7 = tpu.iota {dimensions = array<i32: 1>} : vector<16x16xi32>
    %c2_i32 = arith.constant 2 : i32
    %c0_i32 = arith.constant 0 : i32
    %8 = arith.cmpi eq, %c2_i32, %c0_i32 : i32
    %c1_i32 = arith.constant 1 : i32
    %9 = arith.select %8, %c1_i32, %c2_i32 : i32
    %10 = vector.broadcast %9 : i32 to vector<16x16xi32>
    %11 = arith.remsi %6, %10 : vector<16x16xi32>
    %c0_i32_5 = arith.constant 0 : i32
    %12 = vector.broadcast %c0_i32_5 : i32 to vector<16x16xi32>
    %13 = arith.cmpi ne, %11, %12 : vector<16x16xi32>
    %c0_i32_6 = arith.constant 0 : i32
    %14 = vector.broadcast %c0_i32_6 : i32 to vector<16x16xi32>
    %15 = arith.cmpi slt, %11, %14 : vector<16x16xi32>
    %c0_i32_7 = arith.constant 0 : i32
    %16 = arith.cmpi slt, %9, %c0_i32_7 : i32
    %17 = vector.broadcast %16 : i1 to vector<16x16xi1>
    %18 = vector.broadcast %17 : vector<16x16xi1> to vector<16x16xi1>
    %19 = arith.xori %15, %18 : vector<16x16xi1>
    %20 = arith.andi %19, %13 : vector<16x16xi1>
    %21 = vector.broadcast %9 : i32 to vector<16x16xi32>
    %22 = arith.addi %11, %21 : vector<16x16xi32>
    %23 = arith.select %20, %22, %11 : vector<16x16xi1>, vector<16x16xi32>
    %c2_i32_8 = arith.constant 2 : i32
    %c0_i32_9 = arith.constant 0 : i32
    %24 = arith.cmpi eq, %c2_i32_8, %c0_i32_9 : i32
    %c1_i32_10 = arith.constant 1 : i32
    %25 = arith.select %24, %c1_i32_10, %c2_i32_8 : i32
    %26 = vector.broadcast %25 : i32 to vector<16x16xi32>
    %27 = arith.remsi %7, %26 : vector<16x16xi32>
    %c0_i32_11 = arith.constant 0 : i32
    %28 = vector.broadcast %c0_i32_11 : i32 to vector<16x16xi32>
    %29 = arith.cmpi ne, %27, %28 : vector<16x16xi32>
    %c0_i32_12 = arith.constant 0 : i32
    %30 = vector.broadcast %c0_i32_12 : i32 to vector<16x16xi32>
    %31 = arith.cmpi slt, %27, %30 : vector<16x16xi32>
    %c0_i32_13 = arith.constant 0 : i32
    %32 = arith.cmpi slt, %25, %c0_i32_13 : i32
    %33 = vector.broadcast %32 : i1 to vector<16x16xi1>
    %34 = vector.broadcast %33 : vector<16x16xi1> to vector<16x16xi1>
    %35 = arith.xori %31, %34 : vector<16x16xi1>
    %36 = arith.andi %35, %29 : vector<16x16xi1>
    %37 = vector.broadcast %25 : i32 to vector<16x16xi32>
    %38 = arith.addi %27, %37 : vector<16x16xi32>
    %39 = arith.select %36, %38, %27 : vector<16x16xi1>, vector<16x16xi32>
    %40 = arith.cmpi eq, %23, %39 : vector<16x16xi32>
    %cst_14 = arith.constant 0.000000e+00 : f32
    %cst_15 = arith.constant -1.000000e+30 : f32
    %41 = vector.broadcast %cst_14 : f32 to vector<16x16xf32>
    %42 = vector.broadcast %cst_15 : f32 to vector<16x16xf32>
    %43 = arith.select %40, %41, %42 : vector<16x16xi1>, vector<16x16xf32>
    %c0_16 = arith.constant 0 : index
    %c0_17 = arith.constant 0 : index
    %44 = vector.load %arg3[%c0_16, %c0_17] : memref<32x32xf32, #tpu.memory_space<vmem>>, vector<32x32xf32>
    %cst_18 = arith.constant 0.000000e+00 : f32
    %45 = vector.broadcast %cst_18 : f32 to vector<16x32xf32>
    %46 = vector.extract_strided_slice %5 {offsets = [0, 0], sizes = [16, 8], strides = [1, 1]} : vector<16x96xf32> to vector<16x8xf32>
    %47 = vector.extract_strided_slice %5 {offsets = [0, 32], sizes = [16, 8], strides = [1, 1]} : vector<16x96xf32> to vector<16x8xf32>
    %48 = vector.extract_strided_slice %5 {offsets = [0, 64], sizes = [16, 8], strides = [1, 1]} : vector<16x96xf32> to vector<16x8xf32>
    %cst_19 = arith.constant dense<0.000000e+00> : vector<16x16xf32>
    %49 = tpu.matmul %46, %47, %cst_19 {dimension_numbers = #tpu.dot_dimension_numbers<[1], [1], [0], [0], [0, 0, 1, 0], [], []>} : vector<16x8xf32>, vector<16x8xf32>, vector<16x16xf32> -> vector<16x16xf32>
    %50 = arith.addf %49, %43 : vector<16x16xf32>
    %cst_20 = arith.constant dense<0xFF800000> : vector<16xf32>
    %51 = vector.multi_reduction <maximumf>, %50, %cst_20 [1] : vector<16x16xf32> to vector<16xf32>
    %52 = vector.shape_cast %51 : vector<16xf32> to vector<16x1xf32>
    %53 = vector.broadcast %52 : vector<16x1xf32> to vector<16x16xf32>
    %54 = arith.subf %50, %53 : vector<16x16xf32>
    %55 = math.exp %54 : vector<16x16xf32>
    %cst_21 = arith.constant dense<0.000000e+00> : vector<16xf32>
    %56 = vector.multi_reduction <add>, %55, %cst_21 [1] : vector<16x16xf32> to vector<16xf32>
    %57 = vector.shape_cast %56 : vector<16xf32> to vector<16x1xf32>
    %58 = tpu.reciprocal %57 {approx = true} : vector<16x1xf32> -> vector<16x1xf32>
    %59 = vector.broadcast %58 : vector<16x1xf32> to vector<16x16xf32>
    %60 = arith.mulf %55, %59 : vector<16x16xf32>
    %cst_22 = arith.constant dense<0.000000e+00> : vector<16x8xf32>
    %61 = tpu.matmul %60, %48, %cst_22 {dimension_numbers = #tpu.dot_dimension_numbers<[1], [0], [0], [1], [0, 0, 1, 1], [], []>} : vector<16x16xf32>, vector<16x8xf32>, vector<16x8xf32> -> vector<16x8xf32>
    %62 = vector.extract_strided_slice %44 {offsets = [0, 0], sizes = [8, 32], strides = [1, 1]} : vector<32x32xf32> to vector<8x32xf32>
    %cst_23 = arith.constant dense<0.000000e+00> : vector<16x32xf32>
    %63 = tpu.matmul %61, %62, %cst_23 {dimension_numbers = #tpu.dot_dimension_numbers<[1], [0], [0], [1], [0, 0, 1, 1], [], []>} : vector<16x8xf32>, vector<8x32xf32>, vector<16x32xf32> -> vector<16x32xf32>
    %64 = arith.addf %45, %63 : vector<16x32xf32>
    %65 = vector.extract_strided_slice %5 {offsets = [0, 8], sizes = [16, 8], strides = [1, 1]} : vector<16x96xf32> to vector<16x8xf32>
    %66 = vector.extract_strided_slice %5 {offsets = [0, 40], sizes = [16, 8], strides = [1, 1]} : vector<16x96xf32> to vector<16x8xf32>
    %67 = vector.extract_strided_slice %5 {offsets = [0, 72], sizes = [16, 8], strides = [1, 1]} : vector<16x96xf32> to vector<16x8xf32>
    %cst_24 = arith.constant dense<0.000000e+00> : vector<16x16xf32>
    %68 = tpu.matmul %65, %66, %cst_24 {dimension_numbers = #tpu.dot_dimension_numbers<[1], [1], [0], [0], [0, 0, 1, 0], [], []>} : vector<16x8xf32>, vector<16x8xf32>, vector<16x16xf32> -> vector<16x16xf32>
    %69 = arith.addf %68, %43 : vector<16x16xf32>
    %cst_25 = arith.constant dense<0xFF800000> : vector<16xf32>
    %70 = vector.multi_reduction <maximumf>, %69, %cst_25 [1] : vector<16x16xf32> to vector<16xf32>
    %71 = vector.shape_cast %70 : vector<16xf32> to vector<16x1xf32>
    %72 = vector.broadcast %71 : vector<16x1xf32> to vector<16x16xf32>
    %73 = arith.subf %69, %72 : vector<16x16xf32>
    %74 = math.exp %73 : vector<16x16xf32>
    %cst_26 = arith.constant dense<0.000000e+00> : vector<16xf32>
    %75 = vector.multi_reduction <add>, %74, %cst_26 [1] : vector<16x16xf32> to vector<16xf32>
    %76 = vector.shape_cast %75 : vector<16xf32> to vector<16x1xf32>
    %77 = tpu.reciprocal %76 {approx = true} : vector<16x1xf32> -> vector<16x1xf32>
    %78 = vector.broadcast %77 : vector<16x1xf32> to vector<16x16xf32>
    %79 = arith.mulf %74, %78 : vector<16x16xf32>
    %cst_27 = arith.constant dense<0.000000e+00> : vector<16x8xf32>
    %80 = tpu.matmul %79, %67, %cst_27 {dimension_numbers = #tpu.dot_dimension_numbers<[1], [0], [0], [1], [0, 0, 1, 1], [], []>} : vector<16x16xf32>, vector<16x8xf32>, vector<16x8xf32> -> vector<16x8xf32>
    %81 = vector.extract_strided_slice %44 {offsets = [8, 0], sizes = [8, 32], strides = [1, 1]} : vector<32x32xf32> to vector<8x32xf32>
    %cst_28 = arith.constant dense<0.000000e+00> : vector<16x32xf32>
    %82 = tpu.matmul %80, %81, %cst_28 {dimension_numbers = #tpu.dot_dimension_numbers<[1], [0], [0], [1], [0, 0, 1, 1], [], []>} : vector<16x8xf32>, vector<8x32xf32>, vector<16x32xf32> -> vector<16x32xf32>
    %83 = arith.addf %64, %82 : vector<16x32xf32>
    %84 = vector.extract_strided_slice %5 {offsets = [0, 16], sizes = [16, 8], strides = [1, 1]} : vector<16x96xf32> to vector<16x8xf32>
    %85 = vector.extract_strided_slice %5 {offsets = [0, 48], sizes = [16, 8], strides = [1, 1]} : vector<16x96xf32> to vector<16x8xf32>
    %86 = vector.extract_strided_slice %5 {offsets = [0, 80], sizes = [16, 8], strides = [1, 1]} : vector<16x96xf32> to vector<16x8xf32>
    %cst_29 = arith.constant dense<0.000000e+00> : vector<16x16xf32>
    %87 = tpu.matmul %84, %85, %cst_29 {dimension_numbers = #tpu.dot_dimension_numbers<[1], [1], [0], [0], [0, 0, 1, 0], [], []>} : vector<16x8xf32>, vector<16x8xf32>, vector<16x16xf32> -> vector<16x16xf32>
    %88 = arith.addf %87, %43 : vector<16x16xf32>
    %cst_30 = arith.constant dense<0xFF800000> : vector<16xf32>
    %89 = vector.multi_reduction <maximumf>, %88, %cst_30 [1] : vector<16x16xf32> to vector<16xf32>
    %90 = vector.shape_cast %89 : vector<16xf32> to vector<16x1xf32>
    %91 = vector.broadcast %90 : vector<16x1xf32> to vector<16x16xf32>
    %92 = arith.subf %88, %91 : vector<16x16xf32>
    %93 = math.exp %92 : vector<16x16xf32>
    %cst_31 = arith.constant dense<0.000000e+00> : vector<16xf32>
    %94 = vector.multi_reduction <add>, %93, %cst_31 [1] : vector<16x16xf32> to vector<16xf32>
    %95 = vector.shape_cast %94 : vector<16xf32> to vector<16x1xf32>
    %96 = tpu.reciprocal %95 {approx = true} : vector<16x1xf32> -> vector<16x1xf32>
    %97 = vector.broadcast %96 : vector<16x1xf32> to vector<16x16xf32>
    %98 = arith.mulf %93, %97 : vector<16x16xf32>
    %cst_32 = arith.constant dense<0.000000e+00> : vector<16x8xf32>
    %99 = tpu.matmul %98, %86, %cst_32 {dimension_numbers = #tpu.dot_dimension_numbers<[1], [0], [0], [1], [0, 0, 1, 1], [], []>} : vector<16x16xf32>, vector<16x8xf32>, vector<16x8xf32> -> vector<16x8xf32>
    %100 = vector.extract_strided_slice %44 {offsets = [16, 0], sizes = [8, 32], strides = [1, 1]} : vector<32x32xf32> to vector<8x32xf32>
    %cst_33 = arith.constant dense<0.000000e+00> : vector<16x32xf32>
    %101 = tpu.matmul %99, %100, %cst_33 {dimension_numbers = #tpu.dot_dimension_numbers<[1], [0], [0], [1], [0, 0, 1, 1], [], []>} : vector<16x8xf32>, vector<8x32xf32>, vector<16x32xf32> -> vector<16x32xf32>
    %102 = arith.addf %83, %101 : vector<16x32xf32>
    %103 = vector.extract_strided_slice %5 {offsets = [0, 24], sizes = [16, 8], strides = [1, 1]} : vector<16x96xf32> to vector<16x8xf32>
    %104 = vector.extract_strided_slice %5 {offsets = [0, 56], sizes = [16, 8], strides = [1, 1]} : vector<16x96xf32> to vector<16x8xf32>
    %105 = vector.extract_strided_slice %5 {offsets = [0, 88], sizes = [16, 8], strides = [1, 1]} : vector<16x96xf32> to vector<16x8xf32>
    %cst_34 = arith.constant dense<0.000000e+00> : vector<16x16xf32>
    %106 = tpu.matmul %103, %104, %cst_34 {dimension_numbers = #tpu.dot_dimension_numbers<[1], [1], [0], [0], [0, 0, 1, 0], [], []>} : vector<16x8xf32>, vector<16x8xf32>, vector<16x16xf32> -> vector<16x16xf32>
    %107 = arith.addf %106, %43 : vector<16x16xf32>
    %cst_35 = arith.constant dense<0xFF800000> : vector<16xf32>
    %108 = vector.multi_reduction <maximumf>, %107, %cst_35 [1] : vector<16x16xf32> to vector<16xf32>
    %109 = vector.shape_cast %108 : vector<16xf32> to vector<16x1xf32>
    %110 = vector.broadcast %109 : vector<16x1xf32> to vector<16x16xf32>
    %111 = arith.subf %107, %110 : vector<16x16xf32>
    %112 = math.exp %111 : vector<16x16xf32>
    %cst_36 = arith.constant dense<0.000000e+00> : vector<16xf32>
    %113 = vector.multi_reduction <add>, %112, %cst_36 [1] : vector<16x16xf32> to vector<16xf32>
    %114 = vector.shape_cast %113 : vector<16xf32> to vector<16x1xf32>
    %115 = tpu.reciprocal %114 {approx = true} : vector<16x1xf32> -> vector<16x1xf32>
    %116 = vector.broadcast %115 : vector<16x1xf32> to vector<16x16xf32>
    %117 = arith.mulf %112, %116 : vector<16x16xf32>
    %cst_37 = arith.constant dense<0.000000e+00> : vector<16x8xf32>
    %118 = tpu.matmul %117, %105, %cst_37 {dimension_numbers = #tpu.dot_dimension_numbers<[1], [0], [0], [1], [0, 0, 1, 1], [], []>} : vector<16x16xf32>, vector<16x8xf32>, vector<16x8xf32> -> vector<16x8xf32>
    %119 = vector.extract_strided_slice %44 {offsets = [24, 0], sizes = [8, 32], strides = [1, 1]} : vector<32x32xf32> to vector<8x32xf32>
    %cst_38 = arith.constant dense<0.000000e+00> : vector<16x32xf32>
    %120 = tpu.matmul %118, %119, %cst_38 {dimension_numbers = #tpu.dot_dimension_numbers<[1], [0], [0], [1], [0, 0, 1, 1], [], []>} : vector<16x8xf32>, vector<8x32xf32>, vector<16x32xf32> -> vector<16x32xf32>
    %121 = arith.addf %102, %120 : vector<16x32xf32>
    %c0_39 = arith.constant 0 : index
    %c0_40 = arith.constant 0 : index
    %122 = vector.load %arg4[%c0_39, %c0_40] : memref<1x32xf32, #tpu.memory_space<vmem>>, vector<1x32xf32>
    %123 = vector.broadcast %122 : vector<1x32xf32> to vector<16x32xf32>
    %124 = arith.addf %121, %123 : vector<16x32xf32>
    %125 = arith.addf %0, %124 : vector<16x32xf32>
    %cst_41 = arith.constant dense<0.000000e+00> : vector<16xf32>
    %126 = vector.multi_reduction <add>, %125, %cst_41 [1] : vector<16x32xf32> to vector<16xf32>
    %127 = vector.shape_cast %126 : vector<16xf32> to vector<16x1xf32>
    %cst_42 = arith.constant 3.200000e+01 : f32
    %128 = vector.broadcast %cst_42 : f32 to vector<16x1xf32>
    %129 = arith.divf %127, %128 : vector<16x1xf32>
    %130 = vector.broadcast %129 : vector<16x1xf32> to vector<16x32xf32>
    %131 = arith.subf %125, %130 : vector<16x32xf32>
    %132 = arith.mulf %131, %131 : vector<16x32xf32>
    %cst_43 = arith.constant dense<0.000000e+00> : vector<16xf32>
    %133 = vector.multi_reduction <add>, %132, %cst_43 [1] : vector<16x32xf32> to vector<16xf32>
    %134 = vector.shape_cast %133 : vector<16xf32> to vector<16x1xf32>
    %cst_44 = arith.constant 3.200000e+01 : f32
    %135 = vector.broadcast %cst_44 : f32 to vector<16x1xf32>
    %136 = arith.divf %134, %135 : vector<16x1xf32>
    %cst_45 = arith.constant 9.99999974E-6 : f32
    %137 = vector.broadcast %cst_45 : f32 to vector<16x1xf32>
    %138 = arith.addf %136, %137 : vector<16x1xf32>
    %139 = math.rsqrt %138 : vector<16x1xf32>
    %140 = vector.broadcast %139 : vector<16x1xf32> to vector<16x32xf32>
    %141 = arith.mulf %131, %140 : vector<16x32xf32>
    %c0_46 = arith.constant 0 : index
    %c0_47 = arith.constant 0 : index
    %142 = vector.load %arg9[%c0_46, %c0_47] : memref<1x32xf32, #tpu.memory_space<vmem>>, vector<1x32xf32>
    %143 = vector.broadcast %142 : vector<1x32xf32> to vector<16x32xf32>
    %144 = arith.mulf %141, %143 : vector<16x32xf32>
    %c0_48 = arith.constant 0 : index
    %c0_49 = arith.constant 0 : index
    %145 = vector.load %arg10[%c0_48, %c0_49] : memref<1x32xf32, #tpu.memory_space<vmem>>, vector<1x32xf32>
    %146 = vector.broadcast %145 : vector<1x32xf32> to vector<16x32xf32>
    %147 = arith.addf %144, %146 : vector<16x32xf32>
    %c0_50 = arith.constant 0 : index
    %c0_51 = arith.constant 0 : index
    %148 = vector.load %arg5[%c0_50, %c0_51] : memref<32x64xf32, #tpu.memory_space<vmem>>, vector<32x64xf32>
    %cst_52 = arith.constant dense<0.000000e+00> : vector<16x64xf32>
    %149 = tpu.matmul %147, %148, %cst_52 {dimension_numbers = #tpu.dot_dimension_numbers<[1], [0], [0], [1], [0, 0, 1, 1], [], []>} : vector<16x32xf32>, vector<32x64xf32>, vector<16x64xf32> -> vector<16x64xf32>
    %c0_53 = arith.constant 0 : index
    %c0_54 = arith.constant 0 : index
    %150 = vector.load %arg6[%c0_53, %c0_54] : memref<1x64xf32, #tpu.memory_space<vmem>>, vector<1x64xf32>
    %151 = vector.broadcast %150 : vector<1x64xf32> to vector<16x64xf32>
    %152 = arith.addf %149, %151 : vector<16x64xf32>
    %cst_55 = arith.constant 0.000000e+00 : f32
    %153 = vector.broadcast %cst_55 : f32 to vector<16x64xf32>
    %154 = arith.maximumf %152, %153 : vector<16x64xf32>
    %c0_56 = arith.constant 0 : index
    %c0_57 = arith.constant 0 : index
    %155 = vector.load %arg7[%c0_56, %c0_57] : memref<64x32xf32, #tpu.memory_space<vmem>>, vector<64x32xf32>
    %cst_58 = arith.constant dense<0.000000e+00> : vector<16x32xf32>
    %156 = tpu.matmul %154, %155, %cst_58 {dimension_numbers = #tpu.dot_dimension_numbers<[1], [0], [0], [1], [0, 0, 1, 1], [], []>} : vector<16x64xf32>, vector<64x32xf32>, vector<16x32xf32> -> vector<16x32xf32>
    %c0_59 = arith.constant 0 : index
    %c0_60 = arith.constant 0 : index
    %157 = vector.load %arg8[%c0_59, %c0_60] : memref<1x32xf32, #tpu.memory_space<vmem>>, vector<1x32xf32>
    %158 = vector.broadcast %157 : vector<1x32xf32> to vector<16x32xf32>
    %159 = arith.addf %156, %158 : vector<16x32xf32>
    %160 = arith.addf %147, %159 : vector<16x32xf32>
    %cst_61 = arith.constant dense<0.000000e+00> : vector<16xf32>
    %161 = vector.multi_reduction <add>, %160, %cst_61 [1] : vector<16x32xf32> to vector<16xf32>
    %162 = vector.shape_cast %161 : vector<16xf32> to vector<16x1xf32>
    %cst_62 = arith.constant 3.200000e+01 : f32
    %163 = vector.broadcast %cst_62 : f32 to vector<16x1xf32>
    %164 = arith.divf %162, %163 : vector<16x1xf32>
    %165 = vector.broadcast %164 : vector<16x1xf32> to vector<16x32xf32>
    %166 = arith.subf %160, %165 : vector<16x32xf32>
    %167 = arith.mulf %166, %166 : vector<16x32xf32>
    %cst_63 = arith.constant dense<0.000000e+00> : vector<16xf32>
    %168 = vector.multi_reduction <add>, %167, %cst_63 [1] : vector<16x32xf32> to vector<16xf32>
    %169 = vector.shape_cast %168 : vector<16xf32> to vector<16x1xf32>
    %cst_64 = arith.constant 3.200000e+01 : f32
    %170 = vector.broadcast %cst_64 : f32 to vector<16x1xf32>
    %171 = arith.divf %169, %170 : vector<16x1xf32>
    %cst_65 = arith.constant 9.99999974E-6 : f32
    %172 = vector.broadcast %cst_65 : f32 to vector<16x1xf32>
    %173 = arith.addf %171, %172 : vector<16x1xf32>
    %174 = math.rsqrt %173 : vector<16x1xf32>
    %175 = vector.broadcast %174 : vector<16x1xf32> to vector<16x32xf32>
    %176 = arith.mulf %166, %175 : vector<16x32xf32>
    %c0_66 = arith.constant 0 : index
    %c0_67 = arith.constant 0 : index
    %177 = vector.load %arg11[%c0_66, %c0_67] : memref<1x32xf32, #tpu.memory_space<vmem>>, vector<1x32xf32>
    %178 = vector.broadcast %177 : vector<1x32xf32> to vector<16x32xf32>
    %179 = arith.mulf %176, %178 : vector<16x32xf32>
    %c0_68 = arith.constant 0 : index
    %c0_69 = arith.constant 0 : index
    %180 = vector.load %arg12[%c0_68, %c0_69] : memref<1x32xf32, #tpu.memory_space<vmem>>, vector<1x32xf32>
    %181 = vector.broadcast %180 : vector<1x32xf32> to vector<16x32xf32>
    %182 = arith.addf %179, %181 : vector<16x32xf32>
    %c0_70 = arith.constant 0 : index
    %c0_71 = arith.constant 0 : index
    %183 = vector.load %arg13[%c0_70, %c0_71] : memref<16x32xf32, #tpu.memory_space<vmem>>, vector<16x32xf32>
    tpu.vector_store %arg13[%c0_70, %c0_71], %182 {strides = array<i32>} : memref<16x32xf32, #tpu.memory_space<vmem>>, vector<16x32xf32>,
    return
  }
}

</mosaic_0001>

<llo_original>
// kernel: transformer_decoder_layer.1
$region0: #{transformer_decoder_layer.1}
  #allocation0 [shape = 'u32[]', space=smem, size = 0x4, offset = 0x4, fixed_abs, tag = 'smem constant byte address 0x4 - core index']
  #allocation1 [shape = 'u32[72,128]{1,0:T(1,128)}', space=vmem, size = 0x9000, scoped, tag = 'internal scratch']
  %s0 = inlined_call_operand.hbm [shape: f32[16,32], index: 0, kind: input, shape index: {}]
  %s1 = inlined_call_operand.vmem [shape: f32[32,96], index: 1, kind: input, shape index: {}]
  %s2 = inlined_call_operand.vmem [shape: f32[1,96], index: 2, kind: input, shape index: {}]
  %s3 = inlined_call_operand.vmem [shape: f32[32,32], index: 3, kind: input, shape index: {}]
  %s4 = inlined_call_operand.vmem [shape: f32[1,32], index: 4, kind: input, shape index: {}]
  %s5 = inlined_call_operand.vmem [shape: f32[32,64], index: 5, kind: input, shape index: {}]
  %s6 = inlined_call_operand.hbm [shape: f32[1,64], index: 6, kind: input, shape index: {}]
  %s7 = inlined_call_operand.vmem [shape: f32[64,32], index: 7, kind: input, shape index: {}]
  %s8 = inlined_call_operand.hbm [shape: f32[1,32], index: 8, kind: input, shape index: {}]
  %s9 = inlined_call_operand.vmem [shape: f32[1,32], index: 9, kind: input, shape index: {}]
  %s10 = inlined_call_operand.hbm [shape: f32[1,32], index: 10, kind: input, shape index: {}]
  %s11 = inlined_call_operand.vmem [shape: f32[1,32], index: 11, kind: input, shape index: {}]
  %s12 = inlined_call_operand.hbm [shape: f32[1,32], index: 12, kind: input, shape index: {}]
  %s13 = inlined_call_operand.hbm [shape: f32[16,32], index: 13, kind: output, shape index: {}]
  %s14 = sld [smem:[#allocation0]]
  $region82: #{transformer_decoder_layer.1} parent=0
    _
  %s16 = ssub.s32 1, %s14
  %s17 = scalar_select 0, %s16, %s14
  $region1: #{transformer_decoder_layer.1} parent=0
    #allocation2 [shape = 'u8[8192]{0}', space=vmem, size = 0x2000, scoped, tag = 'input window, operand 0, single buffered']
    #allocation3 [shape = 's32[1]{0}', space=sflag, size = 0x4, scoped, tag = 'scoped memory for transformer_decoder_layer.1']
    #allocation4 [shape = 's32[1]{0}', space=sflag, size = 0x4, scoped, tag = 'scoped memory for transformer_decoder_layer.1']
    #allocation5 [shape = 'u8[512]{0}', space=vmem, size = 0x400, scoped, tag = 'input window, operand 6, single buffered']
    #allocation6 [shape = 's32[1]{0}', space=sflag, size = 0x4, scoped, tag = 'scoped memory for transformer_decoder_layer.1']
    #allocation7 [shape = 'u8[512]{0}', space=vmem, size = 0x400, scoped, tag = 'input window, operand 8, single buffered']
    #allocation8 [shape = 'u8[512]{0}', space=vmem, size = 0x400, scoped, tag = 'input window, operand 10, single buffered']
    #allocation9 [shape = 's32[1]{0}', space=sflag, size = 0x4, scoped, tag = 'scoped memory for transformer_decoder_layer.1']
    #allocation10 [shape = 'u8[512]{0}', space=vmem, size = 0x400, scoped, tag = 'input window, operand 12, single buffered']
    #allocation11 [shape = 'u8[8192]{0}', space=vmem, size = 0x2000, scoped, tag = 'output window, operand 0, single buffered']
    %18 = vsyncpa [#allocation3], 0
    %19 = vsyncpa [#allocation6], 0
    %20 = vsyncpa [#allocation9], 0
    %21 = vsyncpa [#allocation4], 0
    // Predicated region
    $region2: #{transformer_decoder_layer.1} parent=1 // pred_check
      _
    $region3: #{transformer_decoder_layer.1} parent=1 // pred_check_branch
      %23 = sbr.rel (0) target = $region5
    $region4: #{transformer_decoder_layer.1} parent=1 // pred_region
      %25 = vsyncadd [#allocation3], 0
      %s26 = sshll.u32 %s0, 4
      %s27 = int_to_ptr.hbm [resolvable:$true] %s26
      %s28 = sshll.u32 [#allocation2], 4
      %s29 = int_to_ptr.vmem [resolvable:$true] %s28
      %34 = dma.hbm_to_vmem [thread:$0]  %s27, 256, %s29, [#allocation3], 128, 128, 8
    $region5: #{transformer_decoder_layer.1} parent=1 // pred_fallthru
      _
    // Predicated region
    $region6: #{transformer_decoder_layer.1} parent=1 // pred_check
      _
    $region7: #{transformer_decoder_layer.1} parent=1 // pred_check_branch
      %36 = sbr.rel (0) target = $region9
    $region8: #{transformer_decoder_layer.1} parent=1 // pred_region
      _
    $region9: #{transformer_decoder_layer.1} parent=1 // pred_fallthru
      _
    // Predicated region
    $region10: #{transformer_decoder_layer.1} parent=1 // pred_check
      _
    $region11: #{transformer_decoder_layer.1} parent=1 // pred_check_branch
      %38 = sbr.rel (0) target = $region13
    $region12: #{transformer_decoder_layer.1} parent=1 // pred_region
      _
    $region13: #{transformer_decoder_layer.1} parent=1 // pred_fallthru
      _
    // Predicated region
    $region14: #{transformer_decoder_layer.1} parent=1 // pred_check
      _
    $region15: #{transformer_decoder_layer.1} parent=1 // pred_check_branch
      %40 = sbr.rel (0) target = $region17
    $region16: #{transformer_decoder_layer.1} parent=1 // pred_region
      _
    $region17: #{transformer_decoder_layer.1} parent=1 // pred_fallthru
      _
    // Predicated region
    $region18: #{transformer_decoder_layer.1} parent=1 // pred_check
      _
    $region19: #{transformer_decoder_layer.1} parent=1 // pred_check_branch
      %42 = sbr.rel (0) target = $region21
    $region20: #{transformer_decoder_layer.1} parent=1 // pred_region
      _
    $region21: #{transformer_decoder_layer.1} parent=1 // pred_fallthru
      _
    // Predicated region
    $region22: #{transformer_decoder_layer.1} parent=1 // pred_check
      _
    $region23: #{transformer_decoder_layer.1} parent=1 // pred_check_branch
      %44 = sbr.rel (0) target = $region25
    $region24: #{transformer_decoder_layer.1} parent=1 // pred_region
      _
    $region25: #{transformer_decoder_layer.1} parent=1 // pred_fallthru
      _
    // Predicated region
    $region26: #{transformer_decoder_layer.1} parent=1 // pred_check
      _
    $region27: #{transformer_decoder_layer.1} parent=1 // pred_check_branch
      %46 = sbr.rel (0) target = $region29
    $region28: #{transformer_decoder_layer.1} parent=1 // pred_region
      %48 = vsyncadd [#allocation6], 0
      %s50 = sshll.u32 %s6, 4
      %s51 = int_to_ptr.hbm [resolvable:$true] %s50
      %s52 = sshll.u32 [#allocation5], 4
      %s53 = int_to_ptr.vmem [resolvable:$true] %s52
      %55 = dma.hbm_to_vmem [thread:$0]  %s51, 16, %s53, [#allocation6]
    $region29: #{transformer_decoder_layer.1} parent=1 // pred_fallthru
      _
    // Predicated region
    $region30: #{transformer_decoder_layer.1} parent=1 // pred_check
      _
    $region31: #{transformer_decoder_layer.1} parent=1 // pred_check_branch
      %57 = sbr.rel (0) target = $region33
    $region32: #{transformer_decoder_layer.1} parent=1 // pred_region
      _
    $region33: #{transformer_decoder_layer.1} parent=1 // pred_fallthru
      _
    // Predicated region
    $region34: #{transformer_decoder_layer.1} parent=1 // pred_check
      _
    $region35: #{transformer_decoder_layer.1} parent=1 // pred_check_branch
      %59 = sbr.rel (0) target = $region37
    $region36: #{transformer_decoder_layer.1} parent=1 // pred_region
      %61 = vsyncadd [#allocation6], 0
      %s63 = sshll.u32 %s8, 4
      %s64 = int_to_ptr.hbm [resolvable:$true] %s63
      %s65 = sshll.u32 [#allocation7], 4
      %s66 = int_to_ptr.vmem [resolvable:$true] %s65
      %68 = dma.hbm_to_vmem [thread:$0]  %s64, 16, %s66, [#allocation6]
    $region37: #{transformer_decoder_layer.1} parent=1 // pred_fallthru
      _
    // Predicated region
    $region38: #{transformer_decoder_layer.1} parent=1 // pred_check
      _
    $region39: #{transformer_decoder_layer.1} parent=1 // pred_check_branch
      %70 = sbr.rel (0) target = $region41
    $region40: #{transformer_decoder_layer.1} parent=1 // pred_region
      _
    $region41: #{transformer_decoder_layer.1} parent=1 // pred_fallthru
      _
    // Predicated region
    $region42: #{transformer_decoder_layer.1} parent=1 // pred_check
      _
    $region43: #{transformer_decoder_layer.1} parent=1 // pred_check_branch
      %72 = sbr.rel (0) target = $region45
    $region44: #{transformer_decoder_layer.1} parent=1 // pred_region
      %74 = vsyncadd [#allocation9], 0
      %s76 = sshll.u32 %s10, 4
      %s77 = int_to_ptr.hbm [resolvable:$true] %s76
      %s78 = sshll.u32 [#allocation8], 4
      %s79 = int_to_ptr.vmem [resolvable:$true] %s78
      %81 = dma.hbm_to_vmem [thread:$0]  %s77, 16, %s79, [#allocation9]
    $region45: #{transformer_decoder_layer.1} parent=1 // pred_fallthru
      _
    // Predicated region
    $region46: #{transformer_decoder_layer.1} parent=1 // pred_check
      _
    $region47: #{transformer_decoder_layer.1} parent=1 // pred_check_branch
      %83 = sbr.rel (0) target = $region49
    $region48: #{transformer_decoder_layer.1} parent=1 // pred_region
      _
    $region49: #{transformer_decoder_layer.1} parent=1 // pred_fallthru
      _
    // Predicated region
    $region50: #{transformer_decoder_layer.1} parent=1 // pred_check
      _
    $region51: #{transformer_decoder_layer.1} parent=1 // pred_check_branch
      %85 = sbr.rel (0) target = $region53
    $region52: #{transformer_decoder_layer.1} parent=1 // pred_region
      %87 = vsyncadd [#allocation9], 0
      %s89 = sshll.u32 %s12, 4
      %s90 = int_to_ptr.hbm [resolvable:$true] %s89
      %s91 = sshll.u32 [#allocation10], 4
      %s92 = int_to_ptr.vmem [resolvable:$true] %s91
      %94 = dma.hbm_to_vmem [thread:$0]  %s90, 16, %s92, [#allocation9]
    $region53: #{transformer_decoder_layer.1} parent=1 // pred_fallthru
      _
    // Predicated region
    $region54: #{transformer_decoder_layer.1} parent=1 // pred_check
      _
    $region55: #{transformer_decoder_layer.1} parent=1 // pred_check_branch
      %96 = sbr.rel (0) target = $region57
    $region56: #{transformer_decoder_layer.1} parent=1 // pred_region
      %98 = dma.done [#allocation3], 256
    $region57: #{transformer_decoder_layer.1} parent=1 // pred_fallthru
      _
    // Predicated region
    $region58: #{transformer_decoder_layer.1} parent=1 // pred_check
      _
    $region59: #{transformer_decoder_layer.1} parent=1 // pred_check_branch
      %100 = sbr.rel (0) target = $region61
    $region60: #{transformer_decoder_layer.1} parent=1 // pred_region
      %102 = dma.done [#allocation6], 16
    $region61: #{transformer_decoder_layer.1} parent=1 // pred_fallthru
      _
    // Predicated region
    $region62: #{transformer_decoder_layer.1} parent=1 // pred_check
      _
    $region63: #{transformer_decoder_layer.1} parent=1 // pred_check_branch
      %104 = sbr.rel (0) target = $region65
    $region64: #{transformer_decoder_layer.1} parent=1 // pred_region
      %106 = dma.done [#allocation6], 16
    $region65: #{transformer_decoder_layer.1} parent=1 // pred_fallthru
      _
    // Predicated region
    $region66: #{transformer_decoder_layer.1} parent=1 // pred_check
      _
    $region67: #{transformer_decoder_layer.1} parent=1 // pred_check_branch
      %108 = sbr.rel (0) target = $region69
    $region68: #{transformer_decoder_layer.1} parent=1 // pred_region
      %110 = dma.done [#allocation9], 16
    $region69: #{transformer_decoder_layer.1} parent=1 // pred_fallthru
      _
    // Predicated region
    $region70: #{transformer_decoder_layer.1} parent=1 // pred_check
      _
    $region71: #{transformer_decoder_layer.1} parent=1 // pred_check_branch
      %112 = sbr.rel (0) target = $region73
    $region72: #{transformer_decoder_layer.1} parent=1 // pred_region
      %114 = dma.done [#allocation9], 16
    $region73: #{transformer_decoder_layer.1} parent=1 // pred_fallthru
      _
    %v115 = vld [vmem:[#allocation2] sm:$0xff]
    %v116 = vld [vmem:[#allocation2 + $0x8] sm:$0xff]
    %v117 = vld [vmem:[%s1] sm:$0xff]
    %v118 = vld [vmem:[%s1 + $0x8] sm:$0xff]
    %v119 = vld [vmem:[%s1 + $0x10] sm:$0xff]
    %v120 = vld [vmem:[%s1 + $0x18] sm:$0xff]
    %v121 = vld [vmem:[%s2] sm:$0x1]
    %v123 = vperm.slane %v121, 0
    %vm125 = vcmask 261120
    %v127 = vsel %vm125, %v115, 0
    %v130 = vsel %vm125, %v116, 0
    %132 = vmatpush.msra.mxu0 0.0
    %133 = vmatpush.msra.mxu0 0.0
    %134 = vmatpush.msra.mxu0 0.0
    %135 = vmatpush.msra.mxu0 0.0
    %136 = vmatpush.msra.mxu0 0.0
    %137 = vmatpush.msra.mxu0 0.0
    %138 = vmatpush.msra.mxu0 0.0
    %139 = vmatpush.msra.mxu0 0.0
    %140 = vmatpush.msra.mxu0 0.0
    %141 = vmatpush.msra.mxu0 0.0
    %142 = vmatpush.msra.mxu0 0.0
    %143 = vmatpush.msra.mxu0 0.0
    %144 = vmatpush.msra.mxu0 %v120
    %145 = vmatpush.msra.mxu0 %v119
    %146 = vmatpush.msra.mxu0 %v118
    %147 = vmatpush.msra.mxu0 %v117
    %148 = vmatmul.f32.gmra.mxu0 %v127
    %v149 = vpop.f32.mrf.mxu0
    %v150 = vadd.f32 %v123, %v149
    %151 = vmatmul.f32.gmra.mxu0 %v130
    %v152 = vpop.f32.mrf.mxu0
    %v153 = vadd.f32 %v123, %v152
    %154 = vdwg.mxu0
    %v155 = vlaneseq
    %v156 = vshrl.u32 %v155, 7
    %v157 = vadd.s32 %v156, 8
    %v158 = vlaneseq
    %v159 = vand.u32 %v158, 127
    %vm160 = vcmp.lt.s32.totalorder %v156, 0
    %v161 = vsub.s32 0, %v156
    %v162 = vsel %vm160, %v161, %v156
    %v163 = vshrl.u32 %v162, 1
    %v164 = vand.u32 %v162, 1
    %v165 = vsub.s32 0, %v164
    %v166 = vsel %vm160, %v165, %v164
    %vm167 = vcmp.lt.s32.totalorder %v157, 0
    %v168 = vsub.s32 0, %v157
    %v169 = vsel %vm167, %v168, %v157
    %v170 = vshrl.u32 %v169, 1
    %v171 = vand.u32 %v169, 1
    %v172 = vsub.s32 0, %v171
    %v173 = vsel %vm167, %v172, %v171
    %vm174 = vcmp.ne.s32.totalorder %v166, 0
    %vm175 = vcmp.ne.s32.totalorder %v173, 0
    %vm176 = vcmp.lt.s32.totalorder %v166, 0
    %vm177 = vcmp.lt.s32.totalorder %v173, 0
    %vm178 = vmand %vm176, %vm174
    %vm179 = vmand %vm177, %vm175
    %v180 = vadd.s32 %v166, 2
    %v181 = vadd.s32 %v173, 2
    %v182 = vsel %vm178, %v180, %v166
    %v183 = vsel %vm179, %v181, %v173
    %vm184 = vcmp.lt.s32.totalorder %v159, 0
    %v185 = vsub.s32 0, %v159
    %v186 = vsel %vm184, %v185, %v159
    %v187 = vshrl.u32 %v186, 1
    %v188 = vand.u32 %v186, 1
    %v189 = vsub.s32 0, %v188
    %v190 = vsel %vm184, %v189, %v188
    %vm191 = vcmp.ne.s32.totalorder %v190, 0
    %vm192 = vcmp.lt.s32.totalorder %v190, 0
    %vm193 = vmand %vm192, %vm191
    %v194 = vadd.s32 %v190, 2
    %v195 = vsel %vm193, %v194, %v190
    %vm196 = vcmp.eq.s32.totalorder %v182, %v195
    %vm197 = vcmp.eq.s32.totalorder %v183, %v195
    %v198 = vsel %vm196, 0.0, -1e+30
    %v199 = vsel %vm197, 0.0, -1e+30
    %v200 = vld [vmem:[%s3] sm:$0xff]
    %v201 = vld [vmem:[%s3 + $0x8] sm:$0xff]
    %v202 = vld [vmem:[%s3 + $0x10] sm:$0xff]
    %v203 = vld [vmem:[%s3 + $0x18] sm:$0xff]
    %206 = vrot.lane.b32.xlu0 %v150, 96
    %v207 = vpop.permute.xlu0 %206
    %208 = vrot.lane.b32.xlu0 %v153, 96
    %v209 = vpop.permute.xlu0 %208
    %vm210 = vcmask 64512
    %v211 = vsel %vm210, %v150, 0
    %v213 = vsel %vm210, %v153, 0
    %v215 = vsel %vm210, %v207, 0
    %v217 = vsel %vm210, %v209, 0
    %219 = vmatpush.xpose.msra.mxu0 0.0
    %220 = vmatpush.xpose.msra.mxu0 0.0
    %221 = vmatpush.xpose.msra.mxu0 0.0
    %222 = vmatpush.xpose.msra.mxu0 0.0
    %223 = vmatpush.xpose.msra.mxu0 0.0
    %224 = vmatpush.xpose.msra.mxu0 0.0
    %225 = vmatpush.xpose.msra.mxu0 0.0
    %226 = vmatpush.xpose.msra.mxu0 0.0
    %227 = vmatpush.xpose.msra.mxu0 0.0
    %228 = vmatpush.xpose.msra.mxu0 0.0
    %229 = vmatpush.xpose.msra.mxu0 0.0
    %230 = vmatpush.xpose.msra.mxu0 0.0
    %231 = vmatpush.xpose.msra.mxu0 0.0
    %232 = vmatpush.xpose.msra.mxu0 0.0
    %233 = vmatpush.xpose.msra.mxu0 %v217
    %234 = vmatpush.xpose.msra.mxu0 %v215
    %235 = vmatmul.f32.gmra.mxu0 %v211
    %v236 = vpop.f32.mrf.mxu0
    %v237 = vadd.f32 %v198, %v236
    %238 = vmatmul.f32.gmra.mxu0 %v213
    %v239 = vpop.f32.mrf.mxu0
    %v240 = vadd.f32 %v199, %v239
    %241 = vdwg.mxu0
    %vm242 = vcmask 130048
    %v243 = vsel %vm242, %v237, -inf
    %244 = vmax.xlane.f32.xlu0 %v243
    %v245 = vpop.xlane.xlu0 %244
    %v246 = vsel %vm242, %v240, -inf
    %247 = vmax.xlane.f32.xlu0 %v246
    %v248 = vpop.xlane.xlu0 %247
    %v249 = vsub.f32 %v237, %v245
    %v250 = vsub.f32 %v240, %v248
    %v251 = vmul.f32 %v249, 1.442695
    %v252 = vpow.pop %v251
    %v253 = vmul.f32 %v250, 1.442695
    %v254 = vpow.pop %v253
    %v255 = vsel %vm242, %v252, 0.0
    %256 = vadd.xlane.f32.xlu0 %v255
    %v257 = vpop.xlane.xlu0 %256
    %v258 = vsel %vm242, %v254, 0.0
    %259 = vadd.xlane.f32.xlu0 %v258
    %v260 = vpop.xlane.xlu0 %259
    %v261 = vrcp.pop %v257
    %v262 = vrcp.pop %v260
    %v263 = vmul.f32 %v252, %v261
    %v264 = vmul.f32 %v254, %v262
    %265 = vrot.lane.b32.xlu0 %v150, 64
    %v266 = vpop.permute.xlu0 %265
    %267 = vrot.lane.b32.xlu0 %v153, 64
    %v268 = vpop.permute.xlu0 %267
    %v272 = vsel %vm242, %v263, 0
    %v275 = vsel %vm242, %v264, 0
    %277 = vmatpush.msra.mxu0 0.0
    %278 = vmatpush.msra.mxu0 0.0
    %279 = vmatpush.msra.mxu0 0.0
    %280 = vmatpush.msra.mxu0 0.0
    %281 = vmatpush.msra.mxu0 0.0
    %282 = vmatpush.msra.mxu0 0.0
    %283 = vmatpush.msra.mxu0 0.0
    %284 = vmatpush.msra.mxu0 0.0
    %285 = vmatpush.msra.mxu0 0.0
    %286 = vmatpush.msra.mxu0 0.0
    %287 = vmatpush.msra.mxu0 0.0
    %288 = vmatpush.msra.mxu0 0.0
    %289 = vmatpush.msra.mxu0 0.0
    %290 = vmatpush.msra.mxu0 0.0
    %291 = vmatpush.msra.mxu0 %v268
    %292 = vmatpush.msra.mxu0 %v266
    %293 = vmatmul.f32.gmra.mxu0 %v272
    %v294 = vpop.f32.mrf.mxu0
    %v295 = vadd.f32 0.0, %v294
    %296 = vmatmul.f32.gmra.mxu0 %v275
    %v297 = vpop.f32.mrf.mxu0
    %v298 = vadd.f32 0.0, %v297
    %299 = vdwg.mxu0
    %300 = vrot.lane.b32.xlu0 %v150, 120
    %v301 = vpop.permute.xlu0 %300
    %302 = vrot.lane.b32.xlu0 %v153, 120
    %v303 = vpop.permute.xlu0 %302
    %304 = vrot.lane.b32.xlu0 %v150, 88
    %v305 = vpop.permute.xlu0 %304
    %306 = vrot.lane.b32.xlu0 %v153, 88
    %v307 = vpop.permute.xlu0 %306
    %v308 = vsel %vm210, %v301, 0
    %v310 = vsel %vm210, %v303, 0
    %v312 = vsel %vm210, %v305, 0
    %v314 = vsel %vm210, %v307, 0
    %316 = vmatpush.xpose.msra.mxu0 0.0
    %317 = vmatpush.xpose.msra.mxu0 0.0
    %318 = vmatpush.xpose.msra.mxu0 0.0
    %319 = vmatpush.xpose.msra.mxu0 0.0
    %320 = vmatpush.xpose.msra.mxu0 0.0
    %321 = vmatpush.xpose.msra.mxu0 0.0
    %322 = vmatpush.xpose.msra.mxu0 0.0
    %323 = vmatpush.xpose.msra.mxu0 0.0
    %324 = vmatpush.xpose.msra.mxu0 0.0
    %325 = vmatpush.xpose.msra.mxu0 0.0
    %326 = vmatpush.xpose.msra.mxu0 0.0
    %327 = vmatpush.xpose.msra.mxu0 0.0
    %328 = vmatpush.xpose.msra.mxu0 0.0
    %329 = vmatpush.xpose.msra.mxu0 0.0
    %330 = vmatpush.xpose.msra.mxu0 %v314
    %331 = vmatpush.xpose.msra.mxu0 %v312
    %332 = vmatmul.f32.gmra.mxu0 %v308
    %v333 = vpop.f32.mrf.mxu0
    %v334 = vadd.f32 %v198, %v333
    %335 = vmatmul.f32.gmra.mxu0 %v310
    %v336 = vpop.f32.mrf.mxu0
    %v337 = vadd.f32 %v199, %v336
    %338 = vdwg.mxu0
    %v339 = vsel %vm242, %v334, -inf
    %340 = vmax.xlane.f32.xlu0 %v339
    %v341 = vpop.xlane.xlu0 %340
    %v342 = vsel %vm242, %v337, -inf
    %343 = vmax.xlane.f32.xlu0 %v342
    %v344 = vpop.xlane.xlu0 %343
    %v345 = vsub.f32 %v334, %v341
    %v346 = vsub.f32 %v337, %v344
    %v347 = vmul.f32 %v345, 1.442695
    %v348 = vpow.pop %v347
    %v349 = vmul.f32 %v346, 1.442695
    %v350 = vpow.pop %v349
    %v351 = vsel %vm242, %v348, 0.0
    %352 = vadd.xlane.f32.xlu0 %v351
    %v353 = vpop.xlane.xlu0 %352
    %v354 = vsel %vm242, %v350, 0.0
    %355 = vadd.xlane.f32.xlu0 %v354
    %v356 = vpop.xlane.xlu0 %355
    %v357 = vrcp.pop %v353
    %v358 = vrcp.pop %v356
    %v359 = vmul.f32 %v348, %v357
    %v360 = vmul.f32 %v350, %v358
    %361 = vrot.lane.b32.xlu0 %v150, 56
    %v362 = vpop.permute.xlu0 %361
    %363 = vrot.lane.b32.xlu0 %v153, 56
    %v364 = vpop.permute.xlu0 %363
    %v368 = vsel %vm242, %v359, 0
    %v371 = vsel %vm242, %v360, 0
    %373 = vmatpush.msra.mxu0 0.0
    %374 = vmatpush.msra.mxu0 0.0
    %375 = vmatpush.msra.mxu0 0.0
    %376 = vmatpush.msra.mxu0 0.0
    %377 = vmatpush.msra.mxu0 0.0
    %378 = vmatpush.msra.mxu0 0.0
    %379 = vmatpush.msra.mxu0 0.0
    %380 = vmatpush.msra.mxu0 0.0
    %381 = vmatpush.msra.mxu0 0.0
    %382 = vmatpush.msra.mxu0 0.0
    %383 = vmatpush.msra.mxu0 0.0
    %384 = vmatpush.msra.mxu0 0.0
    %385 = vmatpush.msra.mxu0 0.0
    %386 = vmatpush.msra.mxu0 0.0
    %387 = vmatpush.msra.mxu0 %v364
    %388 = vmatpush.msra.mxu0 %v362
    %389 = vmatmul.f32.gmra.mxu0 %v368
    %v390 = vpop.f32.mrf.mxu0
    %v391 = vadd.f32 0.0, %v390
    %392 = vmatmul.f32.gmra.mxu0 %v371
    %v393 = vpop.f32.mrf.mxu0
    %v394 = vadd.f32 0.0, %v393
    %395 = vdwg.mxu0
    %v397 = vsel %vm210, %v391, 0
    %v400 = vsel %vm210, %v394, 0
    %402 = vmatpush.msra.mxu0 0.0
    %403 = vmatpush.msra.mxu0 0.0
    %404 = vmatpush.msra.mxu0 0.0
    %405 = vmatpush.msra.mxu0 0.0
    %406 = vmatpush.msra.mxu0 0.0
    %407 = vmatpush.msra.mxu0 0.0
    %408 = vmatpush.msra.mxu0 0.0
    %409 = vmatpush.msra.mxu0 0.0
    %410 = vmatpush.msra.mxu0 0.0
    %411 = vmatpush.msra.mxu0 0.0
    %412 = vmatpush.msra.mxu0 0.0
    %413 = vmatpush.msra.mxu0 0.0
    %414 = vmatpush.msra.mxu0 0.0
    %415 = vmatpush.msra.mxu0 0.0
    %416 = vmatpush.msra.mxu0 0.0
    %417 = vmatpush.msra.mxu0 %v201
    %418 = vmatmul.f32.gmra.mxu0 %v397
    %v419 = vpop.f32.mrf.mxu0
    %v420 = vadd.f32 0.0, %v419
    %421 = vmatmul.f32.gmra.mxu0 %v400
    %v422 = vpop.f32.mrf.mxu0
    %v423 = vadd.f32 0.0, %v422
    %424 = vdwg.mxu0
    %v426 = vsel %vm210, %v295, 0
    %v429 = vsel %vm210, %v298, 0
    %431 = vmatpush.msra.mxu0 0.0
    %432 = vmatpush.msra.mxu0 0.0
    %433 = vmatpush.msra.mxu0 0.0
    %434 = vmatpush.msra.mxu0 0.0
    %435 = vmatpush.msra.mxu0 0.0
    %436 = vmatpush.msra.mxu0 0.0
    %437 = vmatpush.msra.mxu0 0.0
    %438 = vmatpush.msra.mxu0 0.0
    %439 = vmatpush.msra.mxu0 0.0
    %440 = vmatpush.msra.mxu0 0.0
    %441 = vmatpush.msra.mxu0 0.0
    %442 = vmatpush.msra.mxu0 0.0
    %443 = vmatpush.msra.mxu0 0.0
    %444 = vmatpush.msra.mxu0 0.0
    %445 = vmatpush.msra.mxu0 0.0
    %446 = vmatpush.msra.mxu0 %v200
    %447 = vmatmul.f32.gmra.mxu0 %v426
    %v448 = vpop.f32.mrf.mxu0
    %v449 = vadd.f32 %v420, %v448
    %450 = vmatmul.f32.gmra.mxu0 %v429
    %v451 = vpop.f32.mrf.mxu0
    %v452 = vadd.f32 %v423, %v451
    %453 = vdwg.mxu0
    %454 = vrot.lane.b32.xlu0 %v150, 112
    %v455 = vpop.permute.xlu0 %454
    %456 = vrot.lane.b32.xlu0 %v153, 112
    %v457 = vpop.permute.xlu0 %456
    %458 = vrot.lane.b32.xlu0 %v150, 80
    %v459 = vpop.permute.xlu0 %458
    %460 = vrot.lane.b32.xlu0 %v153, 80
    %v461 = vpop.permute.xlu0 %460
    %v462 = vsel %vm210, %v455, 0
    %v464 = vsel %vm210, %v457, 0
    %v466 = vsel %vm210, %v459, 0
    %v468 = vsel %vm210, %v461, 0
    %470 = vmatpush.xpose.msra.mxu0 0.0
    %471 = vmatpush.xpose.msra.mxu0 0.0
    %472 = vmatpush.xpose.msra.mxu0 0.0
    %473 = vmatpush.xpose.msra.mxu0 0.0
    %474 = vmatpush.xpose.msra.mxu0 0.0
    %475 = vmatpush.xpose.msra.mxu0 0.0
    %476 = vmatpush.xpose.msra.mxu0 0.0
    %477 = vmatpush.xpose.msra.mxu0 0.0
    %478 = vmatpush.xpose.msra.mxu0 0.0
    %479 = vmatpush.xpose.msra.mxu0 0.0
    %480 = vmatpush.xpose.msra.mxu0 0.0
    %481 = vmatpush.xpose.msra.mxu0 0.0
    %482 = vmatpush.xpose.msra.mxu0 0.0
    %483 = vmatpush.xpose.msra.mxu0 0.0
    %484 = vmatpush.xpose.msra.mxu0 %v468
    %485 = vmatpush.xpose.msra.mxu0 %v466
    %486 = vmatmul.f32.gmra.mxu0 %v462
    %v487 = vpop.f32.mrf.mxu0
    %v488 = vadd.f32 %v198, %v487
    %489 = vmatmul.f32.gmra.mxu0 %v464
    %v490 = vpop.f32.mrf.mxu0
    %v491 = vadd.f32 %v199, %v490
    %492 = vdwg.mxu0
    %v493 = vsel %vm242, %v488, -inf
    %494 = vmax.xlane.f32.xlu0 %v493
    %v495 = vpop.xlane.xlu0 %494
    %v496 = vsel %vm242, %v491, -inf
    %497 = vmax.xlane.f32.xlu0 %v496
    %v498 = vpop.xlane.xlu0 %497
    %v499 = vsub.f32 %v488, %v495
    %v500 = vsub.f32 %v491, %v498
    %v501 = vmul.f32 %v499, 1.442695
    %v502 = vpow.pop %v501
    %v503 = vmul.f32 %v500, 1.442695
    %v504 = vpow.pop %v503
    %v505 = vsel %vm242, %v502, 0.0
    %506 = vadd.xlane.f32.xlu0 %v505
    %v507 = vpop.xlane.xlu0 %506
    %v508 = vsel %vm242, %v504, 0.0
    %509 = vadd.xlane.f32.xlu0 %v508
    %v510 = vpop.xlane.xlu0 %509
    %v511 = vrcp.pop %v507
    %v512 = vrcp.pop %v510
    %v513 = vmul.f32 %v502, %v511
    %v514 = vmul.f32 %v504, %v512
    %515 = vrot.lane.b32.xlu0 %v150, 48
    %v516 = vpop.permute.xlu0 %515
    %517 = vrot.lane.b32.xlu0 %v153, 48
    %v518 = vpop.permute.xlu0 %517
    %v522 = vsel %vm242, %v513, 0
    %v525 = vsel %vm242, %v514, 0
    %527 = vmatpush.msra.mxu0 0.0
    %528 = vmatpush.msra.mxu0 0.0
    %529 = vmatpush.msra.mxu0 0.0
    %530 = vmatpush.msra.mxu0 0.0
    %531 = vmatpush.msra.mxu0 0.0
    %532 = vmatpush.msra.mxu0 0.0
    %533 = vmatpush.msra.mxu0 0.0
    %534 = vmatpush.msra.mxu0 0.0
    %535 = vmatpush.msra.mxu0 0.0
    %536 = vmatpush.msra.mxu0 0.0
    %537 = vmatpush.msra.mxu0 0.0
    %538 = vmatpush.msra.mxu0 0.0
    %539 = vmatpush.msra.mxu0 0.0
    %540 = vmatpush.msra.mxu0 0.0
    %541 = vmatpush.msra.mxu0 %v518
    %542 = vmatpush.msra.mxu0 %v516
    %543 = vmatmul.f32.gmra.mxu0 %v522
    %v544 = vpop.f32.mrf.mxu0
    %v545 = vadd.f32 0.0, %v544
    %546 = vmatmul.f32.gmra.mxu0 %v525
    %v547 = vpop.f32.mrf.mxu0
    %v548 = vadd.f32 0.0, %v547
    %549 = vdwg.mxu0
    %v551 = vsel %vm210, %v545, 0
    %v554 = vsel %vm210, %v548, 0
    %556 = vmatpush.msra.mxu0 0.0
    %557 = vmatpush.msra.mxu0 0.0
    %558 = vmatpush.msra.mxu0 0.0
    %559 = vmatpush.msra.mxu0 0.0
    %560 = vmatpush.msra.mxu0 0.0
    %561 = vmatpush.msra.mxu0 0.0
    %562 = vmatpush.msra.mxu0 0.0
    %563 = vmatpush.msra.mxu0 0.0
    %564 = vmatpush.msra.mxu0 0.0
    %565 = vmatpush.msra.mxu0 0.0
    %566 = vmatpush.msra.mxu0 0.0
    %567 = vmatpush.msra.mxu0 0.0
    %568 = vmatpush.msra.mxu0 0.0
    %569 = vmatpush.msra.mxu0 0.0
    %570 = vmatpush.msra.mxu0 0.0
    %571 = vmatpush.msra.mxu0 %v202
    %572 = vmatmul.f32.gmra.mxu0 %v551
    %v573 = vpop.f32.mrf.mxu0
    %v574 = vadd.f32 0.0, %v573
    %575 = vmatmul.f32.gmra.mxu0 %v554
    %v576 = vpop.f32.mrf.mxu0
    %v577 = vadd.f32 0.0, %v576
    %578 = vdwg.mxu0
    %v579 = vadd.f32 %v449, %v574
    %v580 = vadd.f32 %v452, %v577
    %581 = vrot.lane.b32.xlu0 %v150, 104
    %v582 = vpop.permute.xlu0 %581
    %583 = vrot.lane.b32.xlu0 %v153, 104
    %v584 = vpop.permute.xlu0 %583
    %585 = vrot.lane.b32.xlu0 %v150, 72
    %v586 = vpop.permute.xlu0 %585
    %587 = vrot.lane.b32.xlu0 %v153, 72
    %v588 = vpop.permute.xlu0 %587
    %v589 = vsel %vm210, %v582, 0
    %v591 = vsel %vm210, %v584, 0
    %v593 = vsel %vm210, %v586, 0
    %v595 = vsel %vm210, %v588, 0
    %597 = vmatpush.xpose.msra.mxu0 0.0
    %598 = vmatpush.xpose.msra.mxu0 0.0
    %599 = vmatpush.xpose.msra.mxu0 0.0
    %600 = vmatpush.xpose.msra.mxu0 0.0
    %601 = vmatpush.xpose.msra.mxu0 0.0
    %602 = vmatpush.xpose.msra.mxu0 0.0
    %603 = vmatpush.xpose.msra.mxu0 0.0
    %604 = vmatpush.xpose.msra.mxu0 0.0
    %605 = vmatpush.xpose.msra.mxu0 0.0
    %606 = vmatpush.xpose.msra.mxu0 0.0
    %607 = vmatpush.xpose.msra.mxu0 0.0
    %608 = vmatpush.xpose.msra.mxu0 0.0
    %609 = vmatpush.xpose.msra.mxu0 0.0
    %610 = vmatpush.xpose.msra.mxu0 0.0
    %611 = vmatpush.xpose.msra.mxu0 %v595
    %612 = vmatpush.xpose.msra.mxu0 %v593
    %613 = vmatmul.f32.gmra.mxu0 %v589
    %v614 = vpop.f32.mrf.mxu0
    %v615 = vadd.f32 %v198, %v614
    %616 = vmatmul.f32.gmra.mxu0 %v591
    %v617 = vpop.f32.mrf.mxu0
    %v618 = vadd.f32 %v199, %v617
    %619 = vdwg.mxu0
    %v620 = vsel %vm242, %v615, -inf
    %621 = vmax.xlane.f32.xlu0 %v620
    %v622 = vpop.xlane.xlu0 %621
    %v623 = vsel %vm242, %v618, -inf
    %624 = vmax.xlane.f32.xlu0 %v623
    %v625 = vpop.xlane.xlu0 %624
    %v626 = vsub.f32 %v615, %v622
    %v627 = vsub.f32 %v618, %v625
    %v628 = vmul.f32 %v626, 1.442695
    %v629 = vpow.pop %v628
    %v630 = vmul.f32 %v627, 1.442695
    %v631 = vpow.pop %v630
    %v632 = vsel %vm242, %v629, 0.0
    %633 = vadd.xlane.f32.xlu0 %v632
    %v634 = vpop.xlane.xlu0 %633
    %v635 = vsel %vm242, %v631, 0.0
    %636 = vadd.xlane.f32.xlu0 %v635
    %v637 = vpop.xlane.xlu0 %636
    %v638 = vrcp.pop %v634
    %v639 = vrcp.pop %v637
    %v640 = vmul.f32 %v629, %v638
    %v641 = vmul.f32 %v631, %v639
    %642 = vrot.lane.b32.xlu0 %v150, 40
    %v643 = vpop.permute.xlu0 %642
    %644 = vrot.lane.b32.xlu0 %v153, 40
    %v645 = vpop.permute.xlu0 %644
    %v649 = vsel %vm242, %v640, 0
    %v652 = vsel %vm242, %v641, 0
    %654 = vmatpush.msra.mxu0 0.0
    %655 = vmatpush.msra.mxu0 0.0
    %656 = vmatpush.msra.mxu0 0.0
    %657 = vmatpush.msra.mxu0 0.0
    %658 = vmatpush.msra.mxu0 0.0
    %659 = vmatpush.msra.mxu0 0.0
    %660 = vmatpush.msra.mxu0 0.0
    %661 = vmatpush.msra.mxu0 0.0
    %662 = vmatpush.msra.mxu0 0.0
    %663 = vmatpush.msra.mxu0 0.0
    %664 = vmatpush.msra.mxu0 0.0
    %665 = vmatpush.msra.mxu0 0.0
    %666 = vmatpush.msra.mxu0 0.0
    %667 = vmatpush.msra.mxu0 0.0
    %668 = vmatpush.msra.mxu0 %v645
    %669 = vmatpush.msra.mxu0 %v643
    %670 = vmatmul.f32.gmra.mxu0 %v649
    %v671 = vpop.f32.mrf.mxu0
    %v672 = vadd.f32 0.0, %v671
    %673 = vmatmul.f32.gmra.mxu0 %v652
    %v674 = vpop.f32.mrf.mxu0
    %v675 = vadd.f32 0.0, %v674
    %676 = vdwg.mxu0
    %v678 = vsel %vm210, %v672, 0
    %v681 = vsel %vm210, %v675, 0
    %683 = vmatpush.msra.mxu0 0.0
    %684 = vmatpush.msra.mxu0 0.0
    %685 = vmatpush.msra.mxu0 0.0
    %686 = vmatpush.msra.mxu0 0.0
    %687 = vmatpush.msra.mxu0 0.0
    %688 = vmatpush.msra.mxu0 0.0
    %689 = vmatpush.msra.mxu0 0.0
    %690 = vmatpush.msra.mxu0 0.0
    %691 = vmatpush.msra.mxu0 0.0
    %692 = vmatpush.msra.mxu0 0.0
    %693 = vmatpush.msra.mxu0 0.0
    %694 = vmatpush.msra.mxu0 0.0
    %695 = vmatpush.msra.mxu0 0.0
    %696 = vmatpush.msra.mxu0 0.0
    %697 = vmatpush.msra.mxu0 0.0
    %698 = vmatpush.msra.mxu0 %v203
    %699 = vmatmul.f32.gmra.mxu0 %v678
    %v700 = vpop.f32.mrf.mxu0
    %v701 = vadd.f32 0.0, %v700
    %702 = vmatmul.f32.gmra.mxu0 %v681
    %v703 = vpop.f32.mrf.mxu0
    %v704 = vadd.f32 0.0, %v703
    %705 = vdwg.mxu0
    %v706 = vadd.f32 %v579, %v701
    %v707 = vadd.f32 %v580, %v704
    %v708 = vld [vmem:[%s4] sm:$0x1]
    %v710 = vperm.slane %v708, 0
    %v712 = vadd.f32 %v706, %v710
    %v713 = vadd.f32 %v707, %v710
    %v714 = vadd.f32 %v115, %v712
    %v715 = vadd.f32 %v116, %v713
    %v716 = vsel %vm125, %v714, 0.0
    %717 = vadd.xlane.f32.xlu0 %v716
    %v718 = vpop.xlane.xlu0 %717
    %v719 = vsel %vm125, %v715, 0.0
    %720 = vadd.xlane.f32.xlu0 %v719
    %v721 = vpop.xlane.xlu0 %720
    %v722 = vrcp.pop 32.0
    %v723 = vmul.f32 32.0, %v722
    %v724 = vsub.f32 1.0, %v723
    %v725 = vmul.f32 %v722, %v724
    %v726 = vadd.f32 %v722, %v725
    %vm727 = vweird.f32 %v722
    %v728 = vsel %vm727, %v722, %v726
    %v729 = vmul.f32 %v718, %v728
    %v730 = vmul.f32 %v721, %v728
    %v731 = vsub.f32 %v714, %v729
    %v732 = vsub.f32 %v715, %v730
    %v733 = vmul.f32 %v731, %v731
    %v734 = vmul.f32 %v732, %v732
    %v735 = vsel %vm125, %v733, 0.0
    %736 = vadd.xlane.f32.xlu0 %v735
    %v737 = vpop.xlane.xlu0 %736
    %v738 = vsel %vm125, %v734, 0.0
    %739 = vadd.xlane.f32.xlu0 %v738
    %v740 = vpop.xlane.xlu0 %739
    %v741 = vmul.f32 %v737, %v728
    %v742 = vmul.f32 %v740, %v728
    %v743 = vadd.f32 %v741, 1e-05
    %v744 = vadd.f32 %v742, 1e-05
    %v745 = vrsqrt.pop %v743
    %v746 = vmul.f32 %v745, %v743
    %v747 = vmul.f32 %v746, %v745
    %v748 = vmul.f32 0.5, %v747
    %v749 = vsub.f32 1.5, %v748
    %v750 = vmul.f32 %v745, %v749
    %vm751 = vweird.f32 %v743
    %vm752 = vweird.f32 %v745
    %vm753 = vmor %vm751, %vm752
    %v754 = vsel %vm753, %v745, %v750
    %v755 = vrsqrt.pop %v744
    %v756 = vmul.f32 %v755, %v744
    %v757 = vmul.f32 %v756, %v755
    %v758 = vmul.f32 0.5, %v757
    %v759 = vsub.f32 1.5, %v758
    %v760 = vmul.f32 %v755, %v759
    %vm761 = vweird.f32 %v744
    %vm762 = vweird.f32 %v755
    %vm763 = vmor %vm761, %vm762
    %v764 = vsel %vm763, %v755, %v760
    %v765 = vmul.f32 %v731, %v754
    %v766 = vmul.f32 %v732, %v764
    %v767 = vld [vmem:[%s9] sm:$0x1]
    %v769 = vperm.slane %v767, 0
    %v771 = vmul.f32 %v765, %v769
    %v772 = vmul.f32 %v766, %v769
    %v773 = vld [vmem:[#allocation8] sm:$0x1]
    %v775 = vperm.slane %v773, 0
    %v777 = vadd.f32 %v771, %v775
    %v778 = vadd.f32 %v772, %v775
    %v779 = vld [vmem:[%s5] sm:$0xff]
    %v780 = vld [vmem:[%s5 + $0x8] sm:$0xff]
    %v781 = vld [vmem:[%s5 + $0x10] sm:$0xff]
    %v782 = vld [vmem:[%s5 + $0x18] sm:$0xff]
    %v783 = vld [vmem:[#allocation5] sm:$0x1]
    %v785 = vperm.slane %v783, 0
    %v788 = vsel %vm125, %v777, 0
    %v791 = vsel %vm125, %v778, 0
    %793 = vmatpush.msra.mxu0 0.0
    %794 = vmatpush.msra.mxu0 0.0
    %795 = vmatpush.msra.mxu0 0.0
    %796 = vmatpush.msra.mxu0 0.0
    %797 = vmatpush.msra.mxu0 0.0
    %798 = vmatpush.msra.mxu0 0.0
    %799 = vmatpush.msra.mxu0 0.0
    %800 = vmatpush.msra.mxu0 0.0
    %801 = vmatpush.msra.mxu0 0.0
    %802 = vmatpush.msra.mxu0 0.0
    %803 = vmatpush.msra.mxu0 0.0
    %804 = vmatpush.msra.mxu0 0.0
    %805 = vmatpush.msra.mxu0 %v782
    %806 = vmatpush.msra.mxu0 %v781
    %807 = vmatpush.msra.mxu0 %v780
    %808 = vmatpush.msra.mxu0 %v779
    %809 = vmatmul.f32.gmra.mxu0 %v788
    %v810 = vpop.f32.mrf.mxu0
    %v811 = vadd.f32 %v785, %v810
    %812 = vmatmul.f32.gmra.mxu0 %v791
    %v813 = vpop.f32.mrf.mxu0
    %v814 = vadd.f32 %v785, %v813
    %815 = vdwg.mxu0
    %v816 = vmax.f32 %v811, 0.0
    %v817 = vmax.f32 %v814, 0.0
    %v818 = vld [vmem:[%s7] sm:$0xff]
    %v819 = vld [vmem:[%s7 + $0x8] sm:$0xff]
    %v820 = vld [vmem:[%s7 + $0x10] sm:$0xff]
    %v821 = vld [vmem:[%s7 + $0x18] sm:$0xff]
    %v822 = vld [vmem:[%s7 + $0x20] sm:$0xff]
    %v823 = vld [vmem:[%s7 + $0x28] sm:$0xff]
    %v824 = vld [vmem:[%s7 + $0x30] sm:$0xff]
    %v825 = vld [vmem:[%s7 + $0x38] sm:$0xff]
    %v826 = vld [vmem:[#allocation7] sm:$0x1]
    %v828 = vperm.slane %v826, 0
    %vm830 = vcmask 523264
    %v832 = vsel %vm830, %v816, 0
    %v835 = vsel %vm830, %v817, 0
    %837 = vmatpush.msra.mxu0 0.0
    %838 = vmatpush.msra.mxu0 0.0
    %839 = vmatpush.msra.mxu0 0.0
    %840 = vmatpush.msra.mxu0 0.0
    %841 = vmatpush.msra.mxu0 0.0
    %842 = vmatpush.msra.mxu0 0.0
    %843 = vmatpush.msra.mxu0 0.0
    %844 = vmatpush.msra.mxu0 0.0
    %845 = vmatpush.msra.mxu0 %v825
    %846 = vmatpush.msra.mxu0 %v824
    %847 = vmatpush.msra.mxu0 %v823
    %848 = vmatpush.msra.mxu0 %v822
    %849 = vmatpush.msra.mxu0 %v821
    %850 = vmatpush.msra.mxu0 %v820
    %851 = vmatpush.msra.mxu0 %v819
    %852 = vmatpush.msra.mxu0 %v818
    %853 = vmatmul.f32.gmra.mxu0 %v832
    %v854 = vpop.f32.mrf.mxu0
    %v855 = vadd.f32 %v828, %v854
    %856 = vmatmul.f32.gmra.mxu0 %v835
    %v857 = vpop.f32.mrf.mxu0
    %v858 = vadd.f32 %v828, %v857
    %859 = vdwg.mxu0
    %v860 = vadd.f32 %v777, %v855
    %v861 = vadd.f32 %v778, %v858
    %v862 = vsel %vm125, %v860, 0.0
    %863 = vadd.xlane.f32.xlu0 %v862
    %v864 = vpop.xlane.xlu0 %863
    %v865 = vsel %vm125, %v861, 0.0
    %866 = vadd.xlane.f32.xlu0 %v865
    %v867 = vpop.xlane.xlu0 %866
    %v868 = vmul.f32 %v864, %v728
    %v869 = vmul.f32 %v867, %v728
    %v870 = vsub.f32 %v860, %v868
    %v871 = vsub.f32 %v861, %v869
    %v872 = vmul.f32 %v870, %v870
    %v873 = vmul.f32 %v871, %v871
    %v874 = vsel %vm125, %v872, 0.0
    %875 = vadd.xlane.f32.xlu0 %v874
    %v876 = vpop.xlane.xlu0 %875
    %v877 = vsel %vm125, %v873, 0.0
    %878 = vadd.xlane.f32.xlu0 %v877
    %v879 = vpop.xlane.xlu0 %878
    %v880 = vmul.f32 %v876, %v728
    %v881 = vmul.f32 %v879, %v728
    %v882 = vadd.f32 %v880, 1e-05
    %v883 = vadd.f32 %v881, 1e-05
    %v884 = vrsqrt.pop %v882
    %v885 = vmul.f32 %v884, %v882
    %v886 = vmul.f32 %v885, %v884
    %v887 = vmul.f32 0.5, %v886
    %v888 = vsub.f32 1.5, %v887
    %v889 = vmul.f32 %v884, %v888
    %vm890 = vweird.f32 %v882
    %vm891 = vweird.f32 %v884
    %vm892 = vmor %vm890, %vm891
    %v893 = vsel %vm892, %v884, %v889
    %v894 = vrsqrt.pop %v883
    %v895 = vmul.f32 %v894, %v883
    %v896 = vmul.f32 %v895, %v894
    %v897 = vmul.f32 0.5, %v896
    %v898 = vsub.f32 1.5, %v897
    %v899 = vmul.f32 %v894, %v898
    %vm900 = vweird.f32 %v883
    %vm901 = vweird.f32 %v894
    %vm902 = vmor %vm900, %vm901
    %v903 = vsel %vm902, %v894, %v899
    %v904 = vmul.f32 %v870, %v893
    %v905 = vmul.f32 %v871, %v903
    %v906 = vld [vmem:[%s11] sm:$0x1]
    %v908 = vperm.slane %v906, 0
    %v910 = vmul.f32 %v904, %v908
    %v911 = vmul.f32 %v905, %v908
    %v912 = vld [vmem:[#allocation10] sm:$0x1]
    %v914 = vperm.slane %v912, 0
    %v916 = vadd.f32 %v910, %v914
    %v917 = vadd.f32 %v911, %v914
    %918 = vst.msk [vmem:[#allocation11] sm:$0xff] %vm125, %v916
    %919 = vst.msk [vmem:[#allocation11 + $0x8] sm:$0xff] %vm125, %v917
    // Predicated region
    $region74: #{transformer_decoder_layer.1} parent=1 // pred_check
      _
    $region75: #{transformer_decoder_layer.1} parent=1 // pred_check_branch
      %921 = sbr.rel (0) target = $region77
    $region76: #{transformer_decoder_layer.1} parent=1 // pred_region
      %923 = vsyncadd [#allocation4], 0
      %s924 = sshll.u32 [#allocation11], 4
      %s925 = int_to_ptr.vmem [resolvable:$true] %s924
      %s926 = sshll.u32 %s13, 4
      %s927 = int_to_ptr.hbm [resolvable:$true] %s926
      %932 = dma.vmem_to_hbm [thread:$0]  %s925, 256, %s927, [#allocation4], 128, 128, 8
    $region77: #{transformer_decoder_layer.1} parent=1 // pred_fallthru
      _
    // Predicated region
    $region78: #{transformer_decoder_layer.1} parent=1 // pred_check
      _
    $region79: #{transformer_decoder_layer.1} parent=1 // pred_check_branch
      %934 = sbr.rel (0) target = $region81
    $region80: #{transformer_decoder_layer.1} parent=1 // pred_region
      %936 = dma.done [#allocation4], 256
    $region81: #{transformer_decoder_layer.1} parent=1 // pred_fallthru
      _
    %937 = vsyncpa [#allocation3], 1
    %938 = vsyncpa [#allocation6], 1
    %939 = vsyncpa [#allocation9], 1
    %940 = vsyncpa [#allocation4], 1

</llo_original>
